<compile_context>
chip_gen: v5e
topology: v5e:2x2
jax: 0.10.0
libtpu: 0.0.40
codegen_flags: <defaults>
</compile_context>

<pallas_src>
import functools
import math

import numpy as np
import jax
import jax.numpy as jnp
from jax import lax
from jax.experimental import pallas as pl
from jax.experimental.pallas import tpu as pltpu


# ----------------------------------------------------------------------------
# SmoothParticleNets pressure kernels (constants follow spn.KERNEL_FN).
# ----------------------------------------------------------------------------
def _kernel_default_np(d, H):
    # spn "default" pressure kernel.
    return 15.0 / (64.0 * np.pi * H ** 3) * (2.0 - 2.0 * d / H) ** 3


def _kernel_dspiky_np(d, H):
    # spn "dspiky" kernel (derivative of the spiky kernel).
    return -45.0 / (np.pi * H ** 6) * (H - d) ** 2


def _round_up(x, m):
    return (x + m - 1) // m * m


def _choose_tiles(N, B):
    """Return (n_pad, TP, TQ): padded particle count, output tile, reduction tile."""
    n128 = _round_up(N, 128)
    best_pad, best_tp = None, None
    for t in (512, 384, 256, 128):
        pad = _round_up(n128, t)
        if best_pad is None or pad < best_pad:
            best_pad, best_tp = pad, t
    n_pad, tp = best_pad, best_tp
    # v7x has 2 TensorCores: make sure the parallel grid axes (b, j) have at
    # least 2 steps in total so both cores get work.  Negligible cost on the
    # 1-TC chips at the small sizes where this can trigger.
    if B * (n_pad // tp) < 2:
        for t in (256, 128):
            if t < tp and n_pad % t == 0:
                tp = t
                break
    # Reduction tile: largest multiple of 128 dividing n_pad, capped at 1024
    # (keeps the (TQ, TP) f32 temporaries comfortably inside v7x's 64 MiB
    # VMEM while amortizing the ~0.35 us per-grid-step overhead).
    tq = 128
    t = min(1024, n_pad)
    while t >= 128:
        if n_pad % t == 0:
            tq = t
            break
        t -= 128
    return n_pad, tp, tq


# ----------------------------------------------------------------------------
# Pallas kernel: tiled pairwise density (constraint).
#
#   xq_ref : (1, 8, TQ)  neighbor-coordinate tile (xyz on sublanes 0..2,
#                        q lane-dense — contiguous DMA rows)
#   xp_ref : (1, 8, TP)  output-particle coordinate tile (xyz on sublanes,
#                        p lane-dense, matches the output layout)
#   out_ref: (1, 1, TP)  per-particle accumulator / result (lane-dense)
# ----------------------------------------------------------------------------
def _density_kernel(npp_ref, xq_ref, xp_ref, out_ref, *, k1, k2,
                    inv_density_rest, constraint):
    b = pl.program_id(0)
    j = pl.program_id(1)          # output-particle tile (parallel)
    i = pl.program_id(2)          # neighbor / reduction tile (arbitrary)
    n_valid = npp_ref[b]          # scalar from SMEM

    xq_t = xq_ref[0]              # (8, TQ)  (only rows 0..2 carry data)
    xp = xp_ref[0]                # (8, TP)
    tq = xq_t.shape[1]
    tp = xp.shape[1]

    # Poison invalid (padded / out-of-cloud) neighbors on the SMALL (8, TQ)
    # tile with a finite far sentinel: their kernel weight becomes exactly 0
    # after the relu below.  No (TQ, TP)-sized validity mask is needed.
    q_idx = i * tq + lax.broadcasted_iota(jnp.int32, (1, tq), 1)
    xq_t = jnp.where(q_idx < n_valid, xq_t, 1e6)

    # One small XLU transpose; the kernel is VALU-bound so XLU has slack.
    xq = jnp.transpose(xq_t)      # (TQ, 8)

    # Direct VPU pairwise squared distance (d2 seeded from the first product).
    diff = xq[:, 0:1] - xp[0:1, :]          # (TQ,1)-(1,TP) -> (TQ,TP)
    d2 = diff * diff
    for d in (1, 2):
        diff = xq[:, d:d + 1] - xp[d:d + 1, :]
        d2 = d2 + diff * diff
    l2 = jnp.sqrt(d2)

    # spn "default": c0*(2 - 2 d/r)^3 for d < r else 0  ==  max(k1 - k2*d, 0)^3
    # with k1 = 2*cbrt(c0), k2 = k1/r.  W(r)=0 and t<=0 iff d>=r, so the relu
    # replaces the (l2 < radius) compare + select exactly.
    t = jnp.maximum(k1 - k2 * l2, 0.0)
    w = t * (t * t)

    partial = jnp.sum(w, axis=0, keepdims=True)       # (1, TP), lane-dense

    @pl.when(i == 0)
    def _():
        out_ref[0] = jnp.zeros_like(out_ref[0])

    out_ref[0] += partial

    @pl.when(i == pl.num_programs(2) - 1)
    def _():
        dens = out_ref[0]
        if constraint:
            dens = dens * inv_density_rest - 1.0
        p_idx = j * tp + lax.broadcasted_iota(jnp.int32, (1, tp), 1)
        out_ref[0] = jnp.where(p_idx < n_valid, dens, 0.0)


def _pairwise_density(locs, num_points_per_cloud, *, radius, density_rest,
                      constraint):
    locs = jnp.asarray(locs, jnp.float32)
    B, N, D = locs.shape
    assert D == 3, "locs must be (B, N, 3)"

    if num_points_per_cloud is None:
        npp = jnp.full((B,), N, dtype=jnp.int32)
    else:
        npp = jnp.asarray(num_points_per_cloud, dtype=jnp.int32)

    n_pad, TP, TQ = _choose_tiles(N, B)

    # Single lane-dense coordinate layout (B, 8, n_pad) used for BOTH
    # operands: coordinate axis padded 3 -> 8 sublanes, particle axis padded
    # to n_pad (zeros; masked via npp).  Per-tile DMAs are 8 contiguous rows
    # of 4*T bytes instead of T strided 12-byte rows.
    locs_t = jnp.transpose(locs, (0, 2, 1))                       # (B, 3, N)
    locs_t8 = jnp.pad(locs_t, ((0, 0), (0, 5), (0, n_pad - N)))   # (B, 8, n_pad)

    grid = (B, n_pad // TP, n_pad // TQ)

    c0 = 15.0 / (64.0 * math.pi * float(radius) ** 3)
    k1 = 2.0 * c0 ** (1.0 / 3.0)
    k2 = k1 / float(radius)

    kern = functools.partial(
        _density_kernel,
        k1=k1, k2=k2,
        inv_density_rest=(1.0 / float(density_rest)) if constraint else 1.0,
        constraint=constraint,
    )

    out = pl.pallas_call(
        kern,
        out_shape=jax.ShapeDtypeStruct((B, 1, n_pad), jnp.float32),
        grid_spec=pltpu.PrefetchScalarGridSpec(
            num_scalar_prefetch=1,
            grid=grid,
            in_specs=[
                # neighbor (reduction) coordinates, lane-dense: (1, 8, TQ)
                pl.BlockSpec((1, 8, TQ), lambda b, j, i, npp_ref: (b, 0, i)),
                # output-particle coordinates, lane-dense: (1, 8, TP)
                pl.BlockSpec((1, 8, TP), lambda b, j, i, npp_ref: (b, 0, j)),
            ],
            out_specs=pl.BlockSpec((1, 1, TP),
                                   lambda b, j, i, npp_ref: (b, 0, j)),
        ),
        compiler_params=pltpu.CompilerParams(
            dimension_semantics=("parallel", "parallel", "arbitrary"),
            vmem_limit_bytes=48 * 1024 * 1024),
    )(npp, locs_t8, locs_t8)
    return out[:, 0, :N]                              # (B, N)


# ----------------------------------------------------------------------------
# FluidConstraints port.
# ----------------------------------------------------------------------------
class FluidConstraints:
    def __init__(self, sdf, sdf_resolution, sdf_pose, radius,
                 fluidRestDistance=0.6, pressure_kernel="default",
                 derivative_of_pressure_kernel="dspiky",
                 dilation_for_conv_sdf=1 / 100.0, kernel_size_for_sdf=3):
        assert pressure_kernel == "default", "only 'default' kernel implemented"
        self.radius = float(radius)
        self.fluidRestDistance = float(fluidRestDistance) * float(radius)
        self.pressure_kernel = pressure_kernel
        self.derivative_of_pressure_kernel = derivative_of_pressure_kernel
        self.sdf_pose = sdf_pose
        self.idxs = jnp.zeros((1, 1), jnp.float32)
        self.scales = jnp.ones((1, 1), jnp.float32)
        self.max_distance = float(jnp.abs(sdf).max())
        self.stiffness = 0.0
        self.density_rest = 0.0
        self._calculate_rest_density(self.fluidRestDistance)
        # TODO(synk): GradConvSDF / ConvSDF (spn SDF trilinear sampling with
        # poses) used by _fix_static_collisions has no clean Pallas equivalent
        # here and is not implemented.

    # ---- rest-density bookkeeping (plain numpy, init-time only) -------------
    def _tight_pack3D(self, radius, separation, maxPoints):
        dim = int(np.ceil(1.0 * radius / separation))
        points = []
        for z in range(-dim, dim + 1):
            for y in range(-dim, dim + 1):
                for x in range(-dim, dim + 1):
                    xpos = x * separation + (separation * 0.5 if (y + z) & 1
                                             else 0.0)
                    ypos = y * np.sqrt(0.75) * separation
                    zpos = z * np.sqrt(0.75) * separation
                    if xpos ** 2 + ypos ** 2 + zpos ** 2 == 0.0:
                        continue
                    if (len(points) < maxPoints and
                            np.sqrt(xpos ** 2 + ypos ** 2 + zpos ** 2) <= radius):
                        points.append([xpos, ypos, zpos])
        return points

    def _calculate_rest_density(self, fluidRestDistance):
        points = np.array(self._tight_pack3D(self.radius, fluidRestDistance,
                                             2048))
        d = np.sqrt(np.sum(points ** 2, axis=1))
        rho = 0.0
        rhoderiv = 0.0
        for dd in d:
            rho += _kernel_default_np(dd, self.radius)
            rhoderiv += _kernel_dspiky_np(dd, self.radius) ** 2
        self.density_rest = float(rho)
        self.stiffness = float(1.0 / rhoderiv)

    # ---- Pallas-backed compute paths ----------------------------------------
    def computeDensity(self, locs, num_points_per_cloud=None):
        return _pairwise_density(locs, num_points_per_cloud,
                                 radius=self.radius,
                                 density_rest=self.density_rest,
                                 constraint=False)

    def computeDensityConstraint(self, locs, num_points_per_cloud=None):
        return _pairwise_density(locs, num_points_per_cloud,
                                 radius=self.radius,
                                 density_rest=self.density_rest,
                                 constraint=True)

    def computeMeanDensityConstraint(self, locs, num_points_per_cloud=None):
        c = self.computeDensityConstraint(locs, num_points_per_cloud)
        if num_points_per_cloud is not None:
            npp = jnp.asarray(num_points_per_cloud, dtype=jnp.float32)
            return jnp.sum(c, axis=-1) / npp
        return jnp.mean(c, axis=-1)

    def __call__(self, locs, num_points_per_cloud=None):
        # Original forward() raises NotImplementedError; expose the main hot
        # path (density constraint) as the callable.
        return self.computeDensityConstraint(locs, num_points_per_cloud)


# ----------------------------------------------------------------------------
# Pure-JAX reference (mirrors the PyTorch computeDensity / -Constraint).
# ----------------------------------------------------------------------------
def _reference_pairwise(locs, npp, radius, density_rest, constraint):
    d = locs[:, :, None, :] - locs[:, None, :, :]
    l2 = jnp.sqrt(jnp.sum(d * d, axis=-1))
    w = (_kernel_default_np(l2, radius) * (l2 < radius)).astype(jnp.float32)
    N = l2.shape[1]
    ids = jnp.arange(N)
    mask = ((ids[None, :, None] < npp[:, None, None]) &
            (ids[None, None, :] < npp[:, None, None]))
    w = jnp.where(mask, w, 0.0)
    out = jnp.sum(w, axis=-1)
    if constraint:
        out = out / density_rest - 1.0
    out = jnp.where(ids[None, :] < npp[:, None], out, 0.0)
    return out


if __name__ == "__main__":
    key = jax.random.PRNGKey(0)
    k1_, k2_ = jax.random.split(key)

    # Dummy SDF inputs (the ConvSDF path is not part of the translated kernel).
    sdf = jnp.zeros((8, 8, 8), jnp.float32)
    sdf_pose = jnp.zeros((7,), jnp.float32)

    # --- case 1: B=2, N=128 (exact tile), per-cloud masking -------------------
    B, N, radius = 2, 128, 0.1
    locs = jax.random.uniform(k1_, (B, N, 3), dtype=jnp.float32,
                              minval=0.0, maxval=0.5)
    npp = jnp.array([N, 96], dtype=jnp.int32)

    model = FluidConstraints(sdf, sdf_resolution=1.0, sdf_pose=sdf_pose,
                             radius=radius)

    c = jax.block_until_ready(model.computeDensityConstraint(locs, npp))
    c_ref = _reference_pairwise(locs, npp, radius, model.density_rest, True)
    np.testing.assert_allclose(np.asarray(c), np.asarray(c_ref),
                               rtol=5e-3, atol=5e-3)

    dens = jax.block_until_ready(model.computeDensity(locs, npp))
    dens_ref = _reference_pairwise(locs, npp, radius, model.density_rest, False)
    np.testing.assert_allclose(np.asarray(dens), np.asarray(dens_ref),
                               rtol=5e-3, atol=5e-3)

    m = jax.block_until_ready(model.computeMeanDensityConstraint(locs, npp))
    m_ref = jnp.sum(c_ref, axis=-1) / npp.astype(jnp.float32)
    np.testing.assert_allclose(np.asarray(m), np.asarray(m_ref),
                               rtol=5e-3, atol=5e-3)

    # --- case 2: B=1, N=200 (padding + output-tile split path) ----------------
    N2, radius2 = 200, 0.12
    locs2 = jax.random.uniform(k2_, (1, N2, 3), dtype=jnp.float32,
                               minval=0.0, maxval=0.5)
    model2 = FluidConstraints(sdf, sdf_resolution=1.0, sdf_pose=sdf_pose,
                              radius=radius2)
    c2 = jax.block_until_ready(model2.computeDensityConstraint(locs2))
    c2_ref = _reference_pairwise(locs2, jnp.array([N2], jnp.int32), radius2,
                                 model2.density_rest, True)
    np.testing.assert_allclose(np.asarray(c2), np.asarray(c2_ref),
                               rtol=5e-3, atol=5e-3)

    print("KERNEL_OK")
</pallas_src>

<mosaic_0001>
module attributes {stable_mosaic.version = 11 : i64} {
  func.func @_density_kernel(%arg0: i32, %arg1: i32, %arg2: i32, %arg3: memref<2xi32, #tpu.memory_space<smem>>, %arg4: memref<1x8x128xf32, #tpu.memory_space<vmem>>, %arg5: memref<1x8x128xf32, #tpu.memory_space<vmem>>, %arg6: memref<1x1x128xf32, #tpu.memory_space<vmem>>) attributes {dimension_semantics = [#tpu.dimension_semantics<parallel>, #tpu.dimension_semantics<parallel>, #tpu.dimension_semantics<arbitrary>], iteration_bounds = array<i64: 2, 1, 1>, scalar_prefetch = 1 : i64, scratch_operands = 0 : i64, tpu.core_type = #tpu.core_type<tc>, window_params = [{transform_indices = @transform_0, window_bounds = array<i64: 1, 8, 128>}, {transform_indices = @transform_1, window_bounds = array<i64: 1, 8, 128>}, {transform_indices = @transform_2, window_bounds = array<i64: 1, 1, 128>}]} {
    %0 = arith.index_cast %arg0 : i32 to index
    %1 = memref.load %arg3[%0] : memref<2xi32, #tpu.memory_space<smem>>
    %c0 = arith.constant 0 : index
    %c0_0 = arith.constant 0 : index
    %c0_1 = arith.constant 0 : index
    %2 = vector.load %arg4[%c0, %c0_0, %c0_1] : memref<1x8x128xf32, #tpu.memory_space<vmem>>, vector<1x8x128xf32>
    %3 = vector.shape_cast %2 : vector<1x8x128xf32> to vector<8x128xf32>
    %c0_2 = arith.constant 0 : index
    %c0_3 = arith.constant 0 : index
    %c0_4 = arith.constant 0 : index
    %4 = vector.load %arg5[%c0_2, %c0_3, %c0_4] : memref<1x8x128xf32, #tpu.memory_space<vmem>>, vector<1x8x128xf32>
    %5 = vector.shape_cast %4 : vector<1x8x128xf32> to vector<8x128xf32>
    %c128_i32 = arith.constant 128 : i32
    %6 = arith.muli %arg2, %c128_i32 : i32
    %7 = tpu.iota {dimensions = array<i32: 1>} : vector<1x128xi32>
    %8 = vector.broadcast %6 : i32 to vector<1x128xi32>
    %9 = arith.addi %8, %7 : vector<1x128xi32>
    %10 = vector.broadcast %1 : i32 to vector<1x128xi32>
    %11 = arith.cmpi slt, %9, %10 : vector<1x128xi32>
    %cst = arith.constant 1.000000e+06 : f32
    %12 = vector.shape_cast %11 : vector<1x128xi1> to vector<1x128xi1>
    %13 = vector.broadcast %12 : vector<1x128xi1> to vector<8x128xi1>
    %14 = vector.broadcast %cst : f32 to vector<8x128xf32>
    %15 = arith.select %13, %3, %14 : vector<8x128xi1>, vector<8x128xf32>
    %16 = tpu.transpose %15, [1, 0] : vector<8x128xf32> -> vector<128x8xf32>
    %17 = vector.extract_strided_slice %16 {offsets = [0, 0], sizes = [128, 1], strides = [1, 1]} : vector<128x8xf32> to vector<128x1xf32>
    %18 = vector.extract_strided_slice %5 {offsets = [0, 0], sizes = [1, 128], strides = [1, 1]} : vector<8x128xf32> to vector<1x128xf32>
    %19 = vector.broadcast %17 : vector<128x1xf32> to vector<128x128xf32>
    %20 = vector.broadcast %18 : vector<1x128xf32> to vector<128x128xf32>
    %21 = arith.subf %19, %20 : vector<128x128xf32>
    %22 = arith.mulf %21, %21 : vector<128x128xf32>
    %23 = vector.extract_strided_slice %16 {offsets = [0, 1], sizes = [128, 1], strides = [1, 1]} : vector<128x8xf32> to vector<128x1xf32>
    %24 = vector.extract_strided_slice %5 {offsets = [1, 0], sizes = [1, 128], strides = [1, 1]} : vector<8x128xf32> to vector<1x128xf32>
    %25 = vector.broadcast %23 : vector<128x1xf32> to vector<128x128xf32>
    %26 = vector.broadcast %24 : vector<1x128xf32> to vector<128x128xf32>
    %27 = arith.subf %25, %26 : vector<128x128xf32>
    %28 = arith.mulf %27, %27 : vector<128x128xf32>
    %29 = arith.addf %22, %28 : vector<128x128xf32>
    %30 = vector.extract_strided_slice %16 {offsets = [0, 2], sizes = [128, 1], strides = [1, 1]} : vector<128x8xf32> to vector<128x1xf32>
    %31 = vector.extract_strided_slice %5 {offsets = [2, 0], sizes = [1, 128], strides = [1, 1]} : vector<8x128xf32> to vector<1x128xf32>
    %32 = vector.broadcast %30 : vector<128x1xf32> to vector<128x128xf32>
    %33 = vector.broadcast %31 : vector<1x128xf32> to vector<128x128xf32>
    %34 = arith.subf %32, %33 : vector<128x128xf32>
    %35 = arith.mulf %34, %34 : vector<128x128xf32>
    %36 = arith.addf %29, %35 : vector<128x128xf32>
    %37 = math.sqrt %36 : vector<128x128xf32>
    %cst_5 = arith.constant 84.1945114 : f32
    %38 = vector.broadcast %cst_5 : f32 to vector<128x128xf32>
    %39 = arith.mulf %38, %37 : vector<128x128xf32>
    %cst_6 = arith.constant 8.41945171 : f32
    %40 = vector.broadcast %cst_6 : f32 to vector<128x128xf32>
    %41 = arith.subf %40, %39 : vector<128x128xf32>
    %cst_7 = arith.constant 0.000000e+00 : f32
    %42 = vector.broadcast %cst_7 : f32 to vector<128x128xf32>
    %43 = arith.maximumf %41, %42 : vector<128x128xf32>
    %44 = arith.mulf %43, %43 : vector<128x128xf32>
    %45 = arith.mulf %43, %44 : vector<128x128xf32>
    %cst_8 = arith.constant dense<0.000000e+00> : vector<128xf32>
    %46 = vector.multi_reduction <add>, %45, %cst_8 [0] : vector<128x128xf32> to vector<128xf32>
    %47 = vector.shape_cast %46 : vector<128xf32> to vector<1x128xf32>
    %c0_i32 = arith.constant 0 : i32
    %48 = arith.cmpi eq, %arg2, %c0_i32 : i32
    %49 = arith.extui %48 : i1 to i32
    %c0_i32_9 = arith.constant 0 : i32
    %50 = arith.cmpi ne, %49, %c0_i32_9 : i32
    scf.if %50 {
      %cst_18 = arith.constant 0.000000e+00 : f32
      %60 = vector.broadcast %cst_18 : f32 to vector<1x128xf32>
      %c0_19 = arith.constant 0 : index
      %c0_20 = arith.constant 0 : index
      %c0_21 = arith.constant 0 : index
      %61 = vector.load %arg6[%c0_19, %c0_20, %c0_21] : memref<1x1x128xf32, #tpu.memory_space<vmem>>, vector<1x1x128xf32>
      %62 = vector.shape_cast %61 : vector<1x1x128xf32> to vector<1x128xf32>
      %63 = vector.shape_cast %60 : vector<1x128xf32> to vector<1x1x128xf32>
      tpu.vector_store %arg6[%c0_19, %c0_20, %c0_21], %63 {strides = array<i32>} : memref<1x1x128xf32, #tpu.memory_space<vmem>>, vector<1x1x128xf32>,
    } else {
    }
    %c0_10 = arith.constant 0 : index
    %c0_11 = arith.constant 0 : index
    %c0_12 = arith.constant 0 : index
    %51 = vector.load %arg6[%c0_10, %c0_11, %c0_12] : memref<1x1x128xf32, #tpu.memory_space<vmem>>, vector<1x1x128xf32>
    %52 = vector.shape_cast %51 : vector<1x1x128xf32> to vector<1x128xf32>
    %53 = arith.addf %52, %47 : vector<1x128xf32>
    %c0_13 = arith.constant 0 : index
    %c0_14 = arith.constant 0 : index
    %c0_15 = arith.constant 0 : index
    %54 = vector.load %arg6[%c0_13, %c0_14, %c0_15] : memref<1x1x128xf32, #tpu.memory_space<vmem>>, vector<1x1x128xf32>
    %55 = vector.shape_cast %54 : vector<1x1x128xf32> to vector<1x128xf32>
    %56 = vector.shape_cast %53 : vector<1x128xf32> to vector<1x1x128xf32>
    tpu.vector_store %arg6[%c0_13, %c0_14, %c0_15], %56 {strides = array<i32>} : memref<1x1x128xf32, #tpu.memory_space<vmem>>, vector<1x1x128xf32>,
    %c0_i32_16 = arith.constant 0 : i32
    %57 = arith.cmpi eq, %arg2, %c0_i32_16 : i32
    %58 = arith.extui %57 : i1 to i32
    %c0_i32_17 = arith.constant 0 : i32
    %59 = arith.cmpi ne, %58, %c0_i32_17 : i32
    scf.if %59 {
      %c0_18 = arith.constant 0 : index
      %c0_19 = arith.constant 0 : index
      %c0_20 = arith.constant 0 : index
      %60 = vector.load %arg6[%c0_18, %c0_19, %c0_20] : memref<1x1x128xf32, #tpu.memory_space<vmem>>, vector<1x1x128xf32>
      %61 = vector.shape_cast %60 : vector<1x1x128xf32> to vector<1x128xf32>
      %cst_21 = arith.constant 0.00234125508 : f32
      %62 = vector.broadcast %cst_21 : f32 to vector<1x128xf32>
      %63 = arith.mulf %61, %62 : vector<1x128xf32>
      %cst_22 = arith.constant 1.000000e+00 : f32
      %64 = vector.broadcast %cst_22 : f32 to vector<1x128xf32>
      %65 = arith.subf %63, %64 : vector<1x128xf32>
      %c128_i32_23 = arith.constant 128 : i32
      %66 = arith.muli %arg1, %c128_i32_23 : i32
      %67 = tpu.iota {dimensions = array<i32: 1>} : vector<1x128xi32>
      %68 = vector.broadcast %66 : i32 to vector<1x128xi32>
      %69 = arith.addi %68, %67 : vector<1x128xi32>
      %70 = vector.broadcast %1 : i32 to vector<1x128xi32>
      %71 = arith.cmpi slt, %69, %70 : vector<1x128xi32>
      %cst_24 = arith.constant 0.000000e+00 : f32
      %72 = vector.broadcast %cst_24 : f32 to vector<1x128xf32>
      %73 = arith.select %71, %65, %72 : vector<1x128xi1>, vector<1x128xf32>
      %c0_25 = arith.constant 0 : index
      %c0_26 = arith.constant 0 : index
      %c0_27 = arith.constant 0 : index
      %74 = vector.load %arg6[%c0_25, %c0_26, %c0_27] : memref<1x1x128xf32, #tpu.memory_space<vmem>>, vector<1x1x128xf32>
      %75 = vector.shape_cast %74 : vector<1x1x128xf32> to vector<1x128xf32>
      %76 = vector.shape_cast %73 : vector<1x128xf32> to vector<1x1x128xf32>
      tpu.vector_store %arg6[%c0_25, %c0_26, %c0_27], %76 {strides = array<i32>} : memref<1x1x128xf32, #tpu.memory_space<vmem>>, vector<1x1x128xf32>,
    } else {
    }
    return
  }
  func.func @transform_0(%arg0: i32, %arg1: i32, %arg2: i32, %arg3: memref<2xi32, #tpu.memory_space<smem>>) -> (i32, i32, i32) {
    %c0_i32 = arith.constant 0 : i32
    %c0_i32_0 = arith.constant 0 : i32
    return %arg0, %c0_i32, %arg2 : i32, i32, i32
  }
  func.func @transform_1(%arg0: i32, %arg1: i32, %arg2: i32, %arg3: memref<2xi32, #tpu.memory_space<smem>>) -> (i32, i32, i32) {
    %c0_i32 = arith.constant 0 : i32
    %c0_i32_0 = arith.constant 0 : i32
    return %arg0, %c0_i32, %arg1 : i32, i32, i32
  }
  func.func @transform_2(%arg0: i32, %arg1: i32, %arg2: i32, %arg3: memref<2xi32, #tpu.memory_space<smem>>) -> (i32, i32, i32) {
    %c0_i32 = arith.constant 0 : i32
    %c0_i32_0 = arith.constant 0 : i32
    return %arg0, %c0_i32, %arg1 : i32, i32, i32
  }
}

</mosaic_0001>

<llo_original>
// kernel: tpu_custom_call.1
$region0: #{tpu_custom_call.1}
  #allocation0 [shape = 'u32[]', space=smem, size = 0x4, offset = 0x4, fixed_abs, tag = 'smem constant byte address 0x4 - core index']
  #allocation1 [shape = 'u32[72,128]{1,0:T(1,128)}', space=vmem, size = 0x9000, scoped, tag = 'internal scratch']
  #allocation2 [shape = 's32[1]{0}', space=sflag, size = 0x4, scoped, tag = 'scoped memory for tpu_custom_call.1']
  #allocation3 [shape = 'u8[512]{0}', space=smem, size = 0x200, scoped, tag = 'prefetched SMEM operand 0']
  %s0 = inlined_call_operand.hbm [shape: s32[2], index: 0, kind: input, shape index: {}]
  %s1 = inlined_call_operand.hbm [shape: f32[2,8,128], index: 1, kind: input, shape index: {}]
  %s2 = inlined_call_operand.hbm [shape: f32[2,8,128], index: 2, kind: input, shape index: {}]
  %s3 = inlined_call_operand.hbm [shape: f32[2,1,128], index: 3, kind: output, shape index: {}]
  %s4 = sld [smem:[#allocation0]]
  $region57: #{tpu_custom_call.1} parent=0
    _
  %s6 = ssub.s32 1, %s4
  %s7 = scalar_select 0, %s6, %s4
  %s9 = sshll.u32 %s0, 4
  %s10 = int_to_ptr.hbm [resolvable:$true] %s9
  %12 = dma.hbm_to_smem %s10, 16, [#allocation3], [#allocation2]
  %14 = dma.done [#allocation2], 16
  %15 = sfence
  $region1: #{tpu_custom_call.1} parent=0
    #allocation4 [shape = 'u8[8192]{0}', space=vmem, size = 0x2000, scoped, tag = 'input window, operand 1']
    #allocation5 [shape = 's32[2]{0}', space=sflag, size = 0x8, scoped, tag = 'scoped memory for tpu_custom_call.1']
    #allocation6 [shape = 's32[2]{0}', space=sflag, size = 0x8, scoped, tag = 'scoped memory for tpu_custom_call.1']
    #allocation7 [shape = 'u8[8192]{0}', space=vmem, size = 0x2000, scoped, tag = 'input window, operand 2']
    #allocation8 [shape = 's32[2]{0}', space=sflag, size = 0x8, scoped, tag = 'scoped memory for tpu_custom_call.1']
    #allocation9 [shape = 'u8[1024]{0}', space=vmem, size = 0x400, scoped, tag = 'output window, operand 0']
    %16 = vsyncpa [#allocation5], 0
    %s17 = scalar_lea.sflag [#allocation5], 1
    %18 = vsyncpa %s17, 0
    %19 = vsyncpa [#allocation8], 0
    %s20 = scalar_lea.sflag [#allocation8], 1
    %21 = vsyncpa %s20, 0
    %22 = vsyncpa [#allocation6], 0
    %s23 = scalar_lea.sflag [#allocation6], 1
    %24 = vsyncpa %s23, 0
    loop: start=0, step=1, limit=4
    $region2: #{tpu_custom_call.1} parent=1 // loop_pre_header
      _
    $region3: #{tpu_custom_call.1} parent=1 // loop_header
      %s26 = sphi 0, %s30
      %p27 = scmp.ge.s32.totalorder %s26, 4
      %s33 = sphi 0, %s52
      %s34 = sphi 0, %s48
      %s35 = sphi 0, %s44
      %s36 = sphi 0, %s33
      %s37 = sphi 0, %s34
      %s38 = sphi 0, %s35
      %s39 = sphi 0, %s36
      %s40 = sphi 0, %s37
      %s41 = sphi 0, %s38
      %s57 = sphi 0, %s59
      %s60 = sphi 0, %s57
      %s61 = sphi 0, %s60
      %s77 = sphi 0, %s61
      %s85 = sphi 0, %s87
      %s88 = sphi 0, %s85
      %s89 = sphi 0, %s88
      %s105 = sphi 0, %s89
      %s113 = sphi 0, %s115
      %s116 = sphi 0, %s113
      %s117 = sphi 0, %s116
      %s133 = sphi 0, %s117
    $region4: #{tpu_custom_call.1} parent=1 // loop_header_branch
      %29 = sbr.rel (%p27) target = $region8
    $region5: #{tpu_custom_call.1} parent=1 // loop_body
      %s31 = ssub.s32 %s26, 1
      %s32 = ssub.s32 %s26, 2
      %s42 = sadd.s32 1, %s35
      %p43 = scmp.ge.s32.totalorder %s42, 1
      %s44 = scalar_select %p43, 0, %s42
      %s45 = sadd.s32 1, %s34
      %s46 = scalar_select %p43, %s45, %s34
      %p47 = scmp.ge.s32.totalorder %s46, 1
      %s48 = scalar_select %p47, 0, %s46
      %s49 = sadd.s32 1, %s33
      %s50 = scalar_select %p47, %s49, %s33
      %p51 = scmp.ge.s32.totalorder %s50, 2
      %s52 = scalar_select %p51, 0, %s50
      %s53 = ssub.s32 %s33, %s52
      %s54 = ssub.s32 %s35, %s44
      %s55 = sor.u32 %s53, %s54
      %p56 = scmp.eq.s32.totalorder %s55, 0
      %s58 = sadd.s32 %s57, 1
      %s59 = scalar_select %p56, %s57, %s58
      %p62 = pneg %p56
      %p63 = scmp.eq.s32.totalorder %s26, 1
      %p64 = por %p62, %p63
      %p65 = scmp.ne.s32.totalorder %s57, %s60
      %p66 = scmp.eq.s32.totalorder %s26, 0
      %p67 = por %p65, %p66
      %p68 = scmp.ne.s32.totalorder %s57, %s60
      %p69 = scmp.eq.s32.totalorder %s31, 1
      %p70 = por %p68, %p69
      %p71 = scmp.ne.s32.totalorder %s60, %s61
      %p72 = scmp.eq.s32.totalorder %s31, 0
      %p73 = por %p71, %p72
      %p74 = scmp.ne.s32.totalorder %s60, %s61
      %p75 = scmp.eq.s32.totalorder %s32, 1
      %p76 = por %p74, %p75
      %p78 = scmp.ne.s32.totalorder %s61, %s77
      %p79 = scmp.eq.s32.totalorder %s32, 0
      %p80 = por %p78, %p79
      %s81 = ssub.s32 %s33, %s52
      %s82 = ssub.s32 %s34, %s48
      %s83 = sor.u32 %s81, %s82
      %p84 = scmp.eq.s32.totalorder %s83, 0
      %s86 = sadd.s32 %s85, 1
      %s87 = scalar_select %p84, %s85, %s86
      %p90 = pneg %p84
      %p91 = scmp.eq.s32.totalorder %s26, 1
      %p92 = por %p90, %p91
      %p93 = scmp.ne.s32.totalorder %s85, %s88
      %p94 = scmp.eq.s32.totalorder %s26, 0
      %p95 = por %p93, %p94
      %p96 = scmp.ne.s32.totalorder %s85, %s88
      %p97 = scmp.eq.s32.totalorder %s31, 1
      %p98 = por %p96, %p97
      %p99 = scmp.ne.s32.totalorder %s88, %s89
      %p100 = scmp.eq.s32.totalorder %s31, 0
      %p101 = por %p99, %p100
      %p102 = scmp.ne.s32.totalorder %s88, %s89
      %p103 = scmp.eq.s32.totalorder %s32, 1
      %p104 = por %p102, %p103
      %p106 = scmp.ne.s32.totalorder %s89, %s105
      %p107 = scmp.eq.s32.totalorder %s32, 0
      %p108 = por %p106, %p107
      %s109 = ssub.s32 %s33, %s52
      %s110 = ssub.s32 %s34, %s48
      %s111 = sor.u32 %s109, %s110
      %p112 = scmp.eq.s32.totalorder %s111, 0
      %s114 = sadd.s32 %s113, 1
      %s115 = scalar_select %p112, %s113, %s114
      %p118 = pneg %p112
      %p119 = scmp.eq.s32.totalorder %s26, 1
      %p120 = por %p118, %p119
      %p121 = scmp.ne.s32.totalorder %s113, %s116
      %p122 = scmp.eq.s32.totalorder %s26, 0
      %p123 = por %p121, %p122
      %p124 = scmp.ne.s32.totalorder %s113, %s116
      %p125 = scmp.eq.s32.totalorder %s31, 1
      %p126 = por %p124, %p125
      %p127 = scmp.ne.s32.totalorder %s116, %s117
      %p128 = scmp.eq.s32.totalorder %s31, 0
      %p129 = por %p127, %p128
      %p130 = scmp.ne.s32.totalorder %s116, %s117
      %p131 = scmp.eq.s32.totalorder %s32, 1
      %p132 = por %p130, %p131
      %p134 = scmp.ne.s32.totalorder %s117, %s133
      %p135 = scmp.eq.s32.totalorder %s32, 0
      %p136 = por %p134, %p135
      %p137 = scmp.le.s32.totalorder 1, %s26
      %p138 = scmp.lt.s32.totalorder %s26, 3
      %p139 = pnand %p137, %p138
      %p140 = pneg %p139
      // Predicated region
      $region9: #{tpu_custom_call.1} parent=5 // pred_check
        _
      $region10: #{tpu_custom_call.1} parent=5 // pred_check_branch
        %142 = sbr.rel (%p139) target = $region12
      $region11: #{tpu_custom_call.1} parent=5 // pred_region
        %s143 = ssub.s32 %s26, 1
      $region12: #{tpu_custom_call.1} parent=5 // pred_fallthru
        _
      %p144 = scmp.lt.s32.totalorder %s26, 2
      // Predicated region
      $region13: #{tpu_custom_call.1} parent=5 // pred_check
        %p145 = pneg %p144
      $region14: #{tpu_custom_call.1} parent=5 // pred_check_branch
        %147 = sbr.rel (%p145) target = $region16
      $region15: #{tpu_custom_call.1} parent=5 // pred_region
        // Predicated region
        $region17: #{tpu_custom_call.1} parent=15 // pred_check
          %p148 = pneg %p67
        $region18: #{tpu_custom_call.1} parent=15 // pred_check_branch
          %150 = sbr.rel (%p148) target = $region20
        $region19: #{tpu_custom_call.1} parent=15 // pred_region
          %s151 = sand.u32 %s57, 1
          %s152 = scalar_lea.sflag [#allocation5], %s151
          %s153 = sand.u32 %s57, 1
          %s154 = smul.addr %s153, 8
          %s155 = scalar_lea.vmem [#allocation4], %s154
          %157 = vsyncadd %s152, 0
          %s158 = sadd.s32 %s35, %s33
          %s159 = smul.addr %s158, 8
          %s160 = scalar_lea.hbm %s1, %s159
          %s162 = sshll.u32 %s160, 4
          %s163 = int_to_ptr.hbm [resolvable:$true] %s162
          %s164 = sshll.u32 %s155, 4
          %s165 = int_to_ptr.vmem [resolvable:$true] %s164
          %167 = dma.hbm_to_vmem [thread:$0]  %s163, 128, %s165, %s152
        $region20: #{tpu_custom_call.1} parent=15 // pred_fallthru
          _
        // Predicated region
        $region21: #{tpu_custom_call.1} parent=15 // pred_check
          %p168 = pneg %p95
        $region22: #{tpu_custom_call.1} parent=15 // pred_check_branch
          %170 = sbr.rel (%p168) target = $region24
        $region23: #{tpu_custom_call.1} parent=15 // pred_region
          %s171 = sand.u32 %s85, 1
          %s172 = scalar_lea.sflag [#allocation8], %s171
          %s173 = sand.u32 %s85, 1
          %s174 = smul.addr %s173, 8
          %s175 = scalar_lea.vmem [#allocation7], %s174
          %177 = vsyncadd %s172, 0
          %s178 = sadd.s32 %s34, %s33
          %s179 = smul.addr %s178, 8
          %s180 = scalar_lea.hbm %s2, %s179
          %s182 = sshll.u32 %s180, 4
          %s183 = int_to_ptr.hbm [resolvable:$true] %s182
          %s184 = sshll.u32 %s175, 4
          %s185 = int_to_ptr.vmem [resolvable:$true] %s184
          %187 = dma.hbm_to_vmem [thread:$0]  %s183, 128, %s185, %s172
        $region24: #{tpu_custom_call.1} parent=15 // pred_fallthru
          _
      $region16: #{tpu_custom_call.1} parent=5 // pred_fallthru
        _
      %p188 = scmp.le.s32.totalorder 1, %s26
      %p189 = scmp.lt.s32.totalorder %s26, 3
      %p190 = pnand %p188, %p189
      %p191 = pneg %p190
      // Predicated region
      $region25: #{tpu_custom_call.1} parent=5 // pred_check
        _
      $region26: #{tpu_custom_call.1} parent=5 // pred_check_branch
        %193 = sbr.rel (%p190) target = $region28
      $region27: #{tpu_custom_call.1} parent=5 // pred_region
        %s194 = ssub.s32 %s26, 1
        %s195 = sand.u32 %s60, 1
        %s196 = scalar_lea.sflag [#allocation5], %s195
        %s197 = sand.u32 %s60, 1
        %s198 = smul.addr %s197, 8
        %s199 = scalar_lea.vmem [#allocation4], %s198
        // Predicated region
        $region29: #{tpu_custom_call.1} parent=27 // pred_check
          %p200 = pneg %p73
        $region30: #{tpu_custom_call.1} parent=27 // pred_check_branch
          %202 = sbr.rel (%p200) target = $region32
        $region31: #{tpu_custom_call.1} parent=27 // pred_region
          %204 = dma.done %s196, 128
        $region32: #{tpu_custom_call.1} parent=27 // pred_fallthru
          _
        %s205 = sand.u32 %s88, 1
        %s206 = scalar_lea.sflag [#allocation8], %s205
        %s207 = sand.u32 %s88, 1
        %s208 = smul.addr %s207, 8
        %s209 = scalar_lea.vmem [#allocation7], %s208
        // Predicated region
        $region33: #{tpu_custom_call.1} parent=27 // pred_check
          %p210 = pneg %p101
        $region34: #{tpu_custom_call.1} parent=27 // pred_check_branch
          %212 = sbr.rel (%p210) target = $region36
        $region35: #{tpu_custom_call.1} parent=27 // pred_region
          %214 = dma.done %s206, 128
        $region36: #{tpu_custom_call.1} parent=27 // pred_fallthru
          _
        %s215 = sand.u32 %s60, 1
        %s216 = scalar_lea.sflag [#allocation5], %s215
        %s217 = sand.u32 %s60, 1
        %s218 = smul.addr %s217, 8
        %s219 = scalar_lea.vmem [#allocation4], %s218
        %p220 = pneg %p73
        %p221 = pneg %p70
        %s222 = sand.u32 %s88, 1
        %s223 = scalar_lea.sflag [#allocation8], %s222
        %s224 = sand.u32 %s88, 1
        %s225 = smul.addr %s224, 8
        %s226 = scalar_lea.vmem [#allocation7], %s225
        %p227 = pneg %p101
        %p228 = pneg %p98
        %p229 = pneg %p129
        %p230 = pneg %p126
        %s231 = sand.u32 %s116, 1
        %s232 = scalar_lea.sflag [#allocation6], %s231
        %s233 = sand.u32 %s116, 1
        %s234 = scalar_lea.vmem [#allocation9], %s233
        %s235 = sld [smem:[#allocation3 + %s36]]
        %v236 = vld [vmem:[%s199] sm:$0xff]
        %v237 = vld [vmem:[%s209] sm:$0xff]
        %s238 = smul.u32 %s38, 128
        %v239 = vlaneseq
        %v240 = vand.u32 %v239, 127
        %v241 = vstv %s238
        %v242 = vadd.s32 %v241, %v240
        %v243 = vstv %s235
        %vm244 = vcmp.lt.s32.totalorder %v242, %v243
        %v245 = vsel %vm244, 1, 0
        %vm246 = vcmp.eq.s32.totalorder %v245, 1
        %v247 = vsel %vm246, %v236, 1000000.0
        %248 = vxpose.xlu0.b32.start [1/16] %v247, 128
        %249 = vxpose.xlu0.b32.cont [2/16] 0.0, 128
        %250 = vxpose.xlu0.b32.cont [3/16] 0.0, 128
        %251 = vxpose.xlu0.b32.cont [4/16] 0.0, 128
        %252 = vxpose.xlu0.b32.cont [5/16] 0.0, 128
        %253 = vxpose.xlu0.b32.cont [6/16] 0.0, 128
        %254 = vxpose.xlu0.b32.cont [7/16] 0.0, 128
        %255 = vxpose.xlu0.b32.cont [8/16] 0.0, 128
        %256 = vxpose.xlu0.b32.cont [9/16] 0.0, 128
        %257 = vxpose.xlu0.b32.cont [10/16] 0.0, 128
        %258 = vxpose.xlu0.b32.cont [11/16] 0.0, 128
        %259 = vxpose.xlu0.b32.cont [12/16] 0.0, 128
        %260 = vxpose.xlu0.b32.cont [13/16] 0.0, 128
        %261 = vxpose.xlu0.b32.cont [14/16] 0.0, 128
        %262 = vxpose.xlu0.b32.cont [15/16] 0.0, 128
        %263 = vxpose.xlu0.b32.end [16/16] 0.0, 128
        %v264 = vpop.trf.xlu0
        %v265 = vpop.trf.xlu0
        %v266 = vpop.trf.xlu0
        %v267 = vpop.trf.xlu0
        %v268 = vpop.trf.xlu0
        %v269 = vpop.trf.xlu0
        %v270 = vpop.trf.xlu0
        %v271 = vpop.trf.xlu0
        %v272 = vpop.trf.xlu0
        %v273 = vpop.trf.xlu0
        %v274 = vpop.trf.xlu0
        %v275 = vpop.trf.xlu0
        %v276 = vpop.trf.xlu0
        %v277 = vpop.trf.xlu0
        %v278 = vpop.trf.xlu0
        %v279 = vpop.trf.xlu0
        %281 = vset.pattern.permute.xlu0 0
        %282 = vperm.xlu0 %281, %v264
        %v283 = vpop.permute.xlu0 %282
        %286 = vset.pattern.permute.xlu0 0
        %287 = vperm.xlu0 %286, %v265
        %v288 = vpop.permute.xlu0 %287
        %291 = vset.pattern.permute.xlu0 0
        %292 = vperm.xlu0 %291, %v266
        %v293 = vpop.permute.xlu0 %292
        %296 = vset.pattern.permute.xlu0 0
        %297 = vperm.xlu0 %296, %v267
        %v298 = vpop.permute.xlu0 %297
        %301 = vset.pattern.permute.xlu0 0
        %302 = vperm.xlu0 %301, %v268
        %v303 = vpop.permute.xlu0 %302
        %306 = vset.pattern.permute.xlu0 0
        %307 = vperm.xlu0 %306, %v269
        %v308 = vpop.permute.xlu0 %307
        %311 = vset.pattern.permute.xlu0 0
        %312 = vperm.xlu0 %311, %v270
        %v313 = vpop.permute.xlu0 %312
        %316 = vset.pattern.permute.xlu0 0
        %317 = vperm.xlu0 %316, %v271
        %v318 = vpop.permute.xlu0 %317
        %321 = vset.pattern.permute.xlu0 0
        %322 = vperm.xlu0 %321, %v272
        %v323 = vpop.permute.xlu0 %322
        %326 = vset.pattern.permute.xlu0 0
        %327 = vperm.xlu0 %326, %v273
        %v328 = vpop.permute.xlu0 %327
        %331 = vset.pattern.permute.xlu0 0
        %332 = vperm.xlu0 %331, %v274
        %v333 = vpop.permute.xlu0 %332
        %336 = vset.pattern.permute.xlu0 0
        %337 = vperm.xlu0 %336, %v275
        %v338 = vpop.permute.xlu0 %337
        %341 = vset.pattern.permute.xlu0 0
        %342 = vperm.xlu0 %341, %v276
        %v343 = vpop.permute.xlu0 %342
        %346 = vset.pattern.permute.xlu0 0
        %347 = vperm.xlu0 %346, %v277
        %v348 = vpop.permute.xlu0 %347
        %351 = vset.pattern.permute.xlu0 0
        %352 = vperm.xlu0 %351, %v278
        %v353 = vpop.permute.xlu0 %352
        %356 = vset.pattern.permute.xlu0 0
        %357 = vperm.xlu0 %356, %v279
        %v358 = vpop.permute.xlu0 %357
        %v360 = vperm.slane %v237, 0
        %v361 = vsub.f32 %v283, %v360
        %v362 = vsub.f32 %v288, %v360
        %v363 = vsub.f32 %v293, %v360
        %v364 = vsub.f32 %v298, %v360
        %v365 = vsub.f32 %v303, %v360
        %v366 = vsub.f32 %v308, %v360
        %v367 = vsub.f32 %v313, %v360
        %v368 = vsub.f32 %v318, %v360
        %v369 = vsub.f32 %v323, %v360
        %v370 = vsub.f32 %v328, %v360
        %v371 = vsub.f32 %v333, %v360
        %v372 = vsub.f32 %v338, %v360
        %v373 = vsub.f32 %v343, %v360
        %v374 = vsub.f32 %v348, %v360
        %v375 = vsub.f32 %v353, %v360
        %v376 = vsub.f32 %v358, %v360
        %v377 = vmul.f32 %v361, %v361
        %v378 = vmul.f32 %v362, %v362
        %v379 = vmul.f32 %v363, %v363
        %v380 = vmul.f32 %v364, %v364
        %v381 = vmul.f32 %v365, %v365
        %v382 = vmul.f32 %v366, %v366
        %v383 = vmul.f32 %v367, %v367
        %v384 = vmul.f32 %v368, %v368
        %v385 = vmul.f32 %v369, %v369
        %v386 = vmul.f32 %v370, %v370
        %v387 = vmul.f32 %v371, %v371
        %v388 = vmul.f32 %v372, %v372
        %v389 = vmul.f32 %v373, %v373
        %v390 = vmul.f32 %v374, %v374
        %v391 = vmul.f32 %v375, %v375
        %v392 = vmul.f32 %v376, %v376
        %393 = vset.pattern.permute.xlu0 1
        %394 = vperm.xlu0 %393, %v264
        %v395 = vpop.permute.xlu0 %394
        %397 = vset.pattern.permute.xlu0 1
        %398 = vperm.xlu0 %397, %v265
        %v399 = vpop.permute.xlu0 %398
        %401 = vset.pattern.permute.xlu0 1
        %402 = vperm.xlu0 %401, %v266
        %v403 = vpop.permute.xlu0 %402
        %405 = vset.pattern.permute.xlu0 1
        %406 = vperm.xlu0 %405, %v267
        %v407 = vpop.permute.xlu0 %406
        %409 = vset.pattern.permute.xlu0 1
        %410 = vperm.xlu0 %409, %v268
        %v411 = vpop.permute.xlu0 %410
        %413 = vset.pattern.permute.xlu0 1
        %414 = vperm.xlu0 %413, %v269
        %v415 = vpop.permute.xlu0 %414
        %417 = vset.pattern.permute.xlu0 1
        %418 = vperm.xlu0 %417, %v270
        %v419 = vpop.permute.xlu0 %418
        %421 = vset.pattern.permute.xlu0 1
        %422 = vperm.xlu0 %421, %v271
        %v423 = vpop.permute.xlu0 %422
        %425 = vset.pattern.permute.xlu0 1
        %426 = vperm.xlu0 %425, %v272
        %v427 = vpop.permute.xlu0 %426
        %429 = vset.pattern.permute.xlu0 1
        %430 = vperm.xlu0 %429, %v273
        %v431 = vpop.permute.xlu0 %430
        %433 = vset.pattern.permute.xlu0 1
        %434 = vperm.xlu0 %433, %v274
        %v435 = vpop.permute.xlu0 %434
        %437 = vset.pattern.permute.xlu0 1
        %438 = vperm.xlu0 %437, %v275
        %v439 = vpop.permute.xlu0 %438
        %441 = vset.pattern.permute.xlu0 1
        %442 = vperm.xlu0 %441, %v276
        %v443 = vpop.permute.xlu0 %442
        %445 = vset.pattern.permute.xlu0 1
        %446 = vperm.xlu0 %445, %v277
        %v447 = vpop.permute.xlu0 %446
        %449 = vset.pattern.permute.xlu0 1
        %450 = vperm.xlu0 %449, %v278
        %v451 = vpop.permute.xlu0 %450
        %453 = vset.pattern.permute.xlu0 1
        %454 = vperm.xlu0 %453, %v279
        %v455 = vpop.permute.xlu0 %454
        %v457 = vperm.slane %v237, 1
        %v458 = vsub.f32 %v395, %v457
        %v459 = vsub.f32 %v399, %v457
        %v460 = vsub.f32 %v403, %v457
        %v461 = vsub.f32 %v407, %v457
        %v462 = vsub.f32 %v411, %v457
        %v463 = vsub.f32 %v415, %v457
        %v464 = vsub.f32 %v419, %v457
        %v465 = vsub.f32 %v423, %v457
        %v466 = vsub.f32 %v427, %v457
        %v467 = vsub.f32 %v431, %v457
        %v468 = vsub.f32 %v435, %v457
        %v469 = vsub.f32 %v439, %v457
        %v470 = vsub.f32 %v443, %v457
        %v471 = vsub.f32 %v447, %v457
        %v472 = vsub.f32 %v451, %v457
        %v473 = vsub.f32 %v455, %v457
        %v474 = vmul.f32 %v458, %v458
        %v475 = vmul.f32 %v459, %v459
        %v476 = vmul.f32 %v460, %v460
        %v477 = vmul.f32 %v461, %v461
        %v478 = vmul.f32 %v462, %v462
        %v479 = vmul.f32 %v463, %v463
        %v480 = vmul.f32 %v464, %v464
        %v481 = vmul.f32 %v465, %v465
        %v482 = vmul.f32 %v466, %v466
        %v483 = vmul.f32 %v467, %v467
        %v484 = vmul.f32 %v468, %v468
        %v485 = vmul.f32 %v469, %v469
        %v486 = vmul.f32 %v470, %v470
        %v487 = vmul.f32 %v471, %v471
        %v488 = vmul.f32 %v472, %v472
        %v489 = vmul.f32 %v473, %v473
        %v490 = vadd.f32 %v377, %v474
        %v491 = vadd.f32 %v378, %v475
        %v492 = vadd.f32 %v379, %v476
        %v493 = vadd.f32 %v380, %v477
        %v494 = vadd.f32 %v381, %v478
        %v495 = vadd.f32 %v382, %v479
        %v496 = vadd.f32 %v383, %v480
        %v497 = vadd.f32 %v384, %v481
        %v498 = vadd.f32 %v385, %v482
        %v499 = vadd.f32 %v386, %v483
        %v500 = vadd.f32 %v387, %v484
        %v501 = vadd.f32 %v388, %v485
        %v502 = vadd.f32 %v389, %v486
        %v503 = vadd.f32 %v390, %v487
        %v504 = vadd.f32 %v391, %v488
        %v505 = vadd.f32 %v392, %v489
        %506 = vset.pattern.permute.xlu0 2
        %507 = vperm.xlu0 %506, %v264
        %v508 = vpop.permute.xlu0 %507
        %510 = vset.pattern.permute.xlu0 2
        %511 = vperm.xlu0 %510, %v265
        %v512 = vpop.permute.xlu0 %511
        %514 = vset.pattern.permute.xlu0 2
        %515 = vperm.xlu0 %514, %v266
        %v516 = vpop.permute.xlu0 %515
        %518 = vset.pattern.permute.xlu0 2
        %519 = vperm.xlu0 %518, %v267
        %v520 = vpop.permute.xlu0 %519
        %522 = vset.pattern.permute.xlu0 2
        %523 = vperm.xlu0 %522, %v268
        %v524 = vpop.permute.xlu0 %523
        %526 = vset.pattern.permute.xlu0 2
        %527 = vperm.xlu0 %526, %v269
        %v528 = vpop.permute.xlu0 %527
        %530 = vset.pattern.permute.xlu0 2
        %531 = vperm.xlu0 %530, %v270
        %v532 = vpop.permute.xlu0 %531
        %534 = vset.pattern.permute.xlu0 2
        %535 = vperm.xlu0 %534, %v271
        %v536 = vpop.permute.xlu0 %535
        %538 = vset.pattern.permute.xlu0 2
        %539 = vperm.xlu0 %538, %v272
        %v540 = vpop.permute.xlu0 %539
        %542 = vset.pattern.permute.xlu0 2
        %543 = vperm.xlu0 %542, %v273
        %v544 = vpop.permute.xlu0 %543
        %546 = vset.pattern.permute.xlu0 2
        %547 = vperm.xlu0 %546, %v274
        %v548 = vpop.permute.xlu0 %547
        %550 = vset.pattern.permute.xlu0 2
        %551 = vperm.xlu0 %550, %v275
        %v552 = vpop.permute.xlu0 %551
        %554 = vset.pattern.permute.xlu0 2
        %555 = vperm.xlu0 %554, %v276
        %v556 = vpop.permute.xlu0 %555
        %558 = vset.pattern.permute.xlu0 2
        %559 = vperm.xlu0 %558, %v277
        %v560 = vpop.permute.xlu0 %559
        %562 = vset.pattern.permute.xlu0 2
        %563 = vperm.xlu0 %562, %v278
        %v564 = vpop.permute.xlu0 %563
        %566 = vset.pattern.permute.xlu0 2
        %567 = vperm.xlu0 %566, %v279
        %v568 = vpop.permute.xlu0 %567
        %v570 = vperm.slane %v237, 2
        %v571 = vsub.f32 %v508, %v570
        %v572 = vsub.f32 %v512, %v570
        %v573 = vsub.f32 %v516, %v570
        %v574 = vsub.f32 %v520, %v570
        %v575 = vsub.f32 %v524, %v570
        %v576 = vsub.f32 %v528, %v570
        %v577 = vsub.f32 %v532, %v570
        %v578 = vsub.f32 %v536, %v570
        %v579 = vsub.f32 %v540, %v570
        %v580 = vsub.f32 %v544, %v570
        %v581 = vsub.f32 %v548, %v570
        %v582 = vsub.f32 %v552, %v570
        %v583 = vsub.f32 %v556, %v570
        %v584 = vsub.f32 %v560, %v570
        %v585 = vsub.f32 %v564, %v570
        %v586 = vsub.f32 %v568, %v570
        %v587 = vmul.f32 %v571, %v571
        %v588 = vmul.f32 %v572, %v572
        %v589 = vmul.f32 %v573, %v573
        %v590 = vmul.f32 %v574, %v574
        %v591 = vmul.f32 %v575, %v575
        %v592 = vmul.f32 %v576, %v576
        %v593 = vmul.f32 %v577, %v577
        %v594 = vmul.f32 %v578, %v578
        %v595 = vmul.f32 %v579, %v579
        %v596 = vmul.f32 %v580, %v580
        %v597 = vmul.f32 %v581, %v581
        %v598 = vmul.f32 %v582, %v582
        %v599 = vmul.f32 %v583, %v583
        %v600 = vmul.f32 %v584, %v584
        %v601 = vmul.f32 %v585, %v585
        %v602 = vmul.f32 %v586, %v586
        %v603 = vadd.f32 %v490, %v587
        %v604 = vadd.f32 %v491, %v588
        %v605 = vadd.f32 %v492, %v589
        %v606 = vadd.f32 %v493, %v590
        %v607 = vadd.f32 %v494, %v591
        %v608 = vadd.f32 %v495, %v592
        %v609 = vadd.f32 %v496, %v593
        %v610 = vadd.f32 %v497, %v594
        %v611 = vadd.f32 %v498, %v595
        %v612 = vadd.f32 %v499, %v596
        %v613 = vadd.f32 %v500, %v597
        %v614 = vadd.f32 %v501, %v598
        %v615 = vadd.f32 %v502, %v599
        %v616 = vadd.f32 %v503, %v600
        %v617 = vadd.f32 %v504, %v601
        %v618 = vadd.f32 %v505, %v602
        %v619 = vrsqrt.pop %v603
        %v620 = vmul.f32 %v619, %v603
        %v621 = vmul.f32 %v620, %v619
        %v622 = vmul.f32 0.5, %v621
        %v623 = vsub.f32 1.5, %v622
        %v624 = vmul.f32 %v619, %v623
        %v625 = vmul.f32 %v603, %v624
        %vm626 = vcmp.eq.f32.partialorder %v603, inf
        %v627 = vsel %vm626, %v603, %v625
        %vm628 = vcmp.eq.f32.partialorder %v603, 0.0
        %v629 = vand.u32 %v603, 2147483648
        %v630 = vsel %vm628, %v629, %v627
        %v631 = vrsqrt.pop %v604
        %v632 = vmul.f32 %v631, %v604
        %v633 = vmul.f32 %v632, %v631
        %v634 = vmul.f32 0.5, %v633
        %v635 = vsub.f32 1.5, %v634
        %v636 = vmul.f32 %v631, %v635
        %v637 = vmul.f32 %v604, %v636
        %vm638 = vcmp.eq.f32.partialorder %v604, inf
        %v639 = vsel %vm638, %v604, %v637
        %vm640 = vcmp.eq.f32.partialorder %v604, 0.0
        %v641 = vand.u32 %v604, 2147483648
        %v642 = vsel %vm640, %v641, %v639
        %v643 = vrsqrt.pop %v605
        %v644 = vmul.f32 %v643, %v605
        %v645 = vmul.f32 %v644, %v643
        %v646 = vmul.f32 0.5, %v645
        %v647 = vsub.f32 1.5, %v646
        %v648 = vmul.f32 %v643, %v647
        %v649 = vmul.f32 %v605, %v648
        %vm650 = vcmp.eq.f32.partialorder %v605, inf
        %v651 = vsel %vm650, %v605, %v649
        %vm652 = vcmp.eq.f32.partialorder %v605, 0.0
        %v653 = vand.u32 %v605, 2147483648
        %v654 = vsel %vm652, %v653, %v651
        %v655 = vrsqrt.pop %v606
        %v656 = vmul.f32 %v655, %v606
        %v657 = vmul.f32 %v656, %v655
        %v658 = vmul.f32 0.5, %v657
        %v659 = vsub.f32 1.5, %v658
        %v660 = vmul.f32 %v655, %v659
        %v661 = vmul.f32 %v606, %v660
        %vm662 = vcmp.eq.f32.partialorder %v606, inf
        %v663 = vsel %vm662, %v606, %v661
        %vm664 = vcmp.eq.f32.partialorder %v606, 0.0
        %v665 = vand.u32 %v606, 2147483648
        %v666 = vsel %vm664, %v665, %v663
        %v667 = vrsqrt.pop %v607
        %v668 = vmul.f32 %v667, %v607
        %v669 = vmul.f32 %v668, %v667
        %v670 = vmul.f32 0.5, %v669
        %v671 = vsub.f32 1.5, %v670
        %v672 = vmul.f32 %v667, %v671
        %v673 = vmul.f32 %v607, %v672
        %vm674 = vcmp.eq.f32.partialorder %v607, inf
        %v675 = vsel %vm674, %v607, %v673
        %vm676 = vcmp.eq.f32.partialorder %v607, 0.0
        %v677 = vand.u32 %v607, 2147483648
        %v678 = vsel %vm676, %v677, %v675
        %v679 = vrsqrt.pop %v608
        %v680 = vmul.f32 %v679, %v608
        %v681 = vmul.f32 %v680, %v679
        %v682 = vmul.f32 0.5, %v681
        %v683 = vsub.f32 1.5, %v682
        %v684 = vmul.f32 %v679, %v683
        %v685 = vmul.f32 %v608, %v684
        %vm686 = vcmp.eq.f32.partialorder %v608, inf
        %v687 = vsel %vm686, %v608, %v685
        %vm688 = vcmp.eq.f32.partialorder %v608, 0.0
        %v689 = vand.u32 %v608, 2147483648
        %v690 = vsel %vm688, %v689, %v687
        %v691 = vrsqrt.pop %v609
        %v692 = vmul.f32 %v691, %v609
        %v693 = vmul.f32 %v692, %v691
        %v694 = vmul.f32 0.5, %v693
        %v695 = vsub.f32 1.5, %v694
        %v696 = vmul.f32 %v691, %v695
        %v697 = vmul.f32 %v609, %v696
        %vm698 = vcmp.eq.f32.partialorder %v609, inf
        %v699 = vsel %vm698, %v609, %v697
        %vm700 = vcmp.eq.f32.partialorder %v609, 0.0
        %v701 = vand.u32 %v609, 2147483648
        %v702 = vsel %vm700, %v701, %v699
        %v703 = vrsqrt.pop %v610
        %v704 = vmul.f32 %v703, %v610
        %v705 = vmul.f32 %v704, %v703
        %v706 = vmul.f32 0.5, %v705
        %v707 = vsub.f32 1.5, %v706
        %v708 = vmul.f32 %v703, %v707
        %v709 = vmul.f32 %v610, %v708
        %vm710 = vcmp.eq.f32.partialorder %v610, inf
        %v711 = vsel %vm710, %v610, %v709
        %vm712 = vcmp.eq.f32.partialorder %v610, 0.0
        %v713 = vand.u32 %v610, 2147483648
        %v714 = vsel %vm712, %v713, %v711
        %v715 = vrsqrt.pop %v611
        %v716 = vmul.f32 %v715, %v611
        %v717 = vmul.f32 %v716, %v715
        %v718 = vmul.f32 0.5, %v717
        %v719 = vsub.f32 1.5, %v718
        %v720 = vmul.f32 %v715, %v719
        %v721 = vmul.f32 %v611, %v720
        %vm722 = vcmp.eq.f32.partialorder %v611, inf
        %v723 = vsel %vm722, %v611, %v721
        %vm724 = vcmp.eq.f32.partialorder %v611, 0.0
        %v725 = vand.u32 %v611, 2147483648
        %v726 = vsel %vm724, %v725, %v723
        %v727 = vrsqrt.pop %v612
        %v728 = vmul.f32 %v727, %v612
        %v729 = vmul.f32 %v728, %v727
        %v730 = vmul.f32 0.5, %v729
        %v731 = vsub.f32 1.5, %v730
        %v732 = vmul.f32 %v727, %v731
        %v733 = vmul.f32 %v612, %v732
        %vm734 = vcmp.eq.f32.partialorder %v612, inf
        %v735 = vsel %vm734, %v612, %v733
        %vm736 = vcmp.eq.f32.partialorder %v612, 0.0
        %v737 = vand.u32 %v612, 2147483648
        %v738 = vsel %vm736, %v737, %v735
        %v739 = vrsqrt.pop %v613
        %v740 = vmul.f32 %v739, %v613
        %v741 = vmul.f32 %v740, %v739
        %v742 = vmul.f32 0.5, %v741
        %v743 = vsub.f32 1.5, %v742
        %v744 = vmul.f32 %v739, %v743
        %v745 = vmul.f32 %v613, %v744
        %vm746 = vcmp.eq.f32.partialorder %v613, inf
        %v747 = vsel %vm746, %v613, %v745
        %vm748 = vcmp.eq.f32.partialorder %v613, 0.0
        %v749 = vand.u32 %v613, 2147483648
        %v750 = vsel %vm748, %v749, %v747
        %v751 = vrsqrt.pop %v614
        %v752 = vmul.f32 %v751, %v614
        %v753 = vmul.f32 %v752, %v751
        %v754 = vmul.f32 0.5, %v753
        %v755 = vsub.f32 1.5, %v754
        %v756 = vmul.f32 %v751, %v755
        %v757 = vmul.f32 %v614, %v756
        %vm758 = vcmp.eq.f32.partialorder %v614, inf
        %v759 = vsel %vm758, %v614, %v757
        %vm760 = vcmp.eq.f32.partialorder %v614, 0.0
        %v761 = vand.u32 %v614, 2147483648
        %v762 = vsel %vm760, %v761, %v759
        %v763 = vrsqrt.pop %v615
        %v764 = vmul.f32 %v763, %v615
        %v765 = vmul.f32 %v764, %v763
        %v766 = vmul.f32 0.5, %v765
        %v767 = vsub.f32 1.5, %v766
        %v768 = vmul.f32 %v763, %v767
        %v769 = vmul.f32 %v615, %v768
        %vm770 = vcmp.eq.f32.partialorder %v615, inf
        %v771 = vsel %vm770, %v615, %v769
        %vm772 = vcmp.eq.f32.partialorder %v615, 0.0
        %v773 = vand.u32 %v615, 2147483648
        %v774 = vsel %vm772, %v773, %v771
        %v775 = vrsqrt.pop %v616
        %v776 = vmul.f32 %v775, %v616
        %v777 = vmul.f32 %v776, %v775
        %v778 = vmul.f32 0.5, %v777
        %v779 = vsub.f32 1.5, %v778
        %v780 = vmul.f32 %v775, %v779
        %v781 = vmul.f32 %v616, %v780
        %vm782 = vcmp.eq.f32.partialorder %v616, inf
        %v783 = vsel %vm782, %v616, %v781
        %vm784 = vcmp.eq.f32.partialorder %v616, 0.0
        %v785 = vand.u32 %v616, 2147483648
        %v786 = vsel %vm784, %v785, %v783
        %v787 = vrsqrt.pop %v617
        %v788 = vmul.f32 %v787, %v617
        %v789 = vmul.f32 %v788, %v787
        %v790 = vmul.f32 0.5, %v789
        %v791 = vsub.f32 1.5, %v790
        %v792 = vmul.f32 %v787, %v791
        %v793 = vmul.f32 %v617, %v792
        %vm794 = vcmp.eq.f32.partialorder %v617, inf
        %v795 = vsel %vm794, %v617, %v793
        %vm796 = vcmp.eq.f32.partialorder %v617, 0.0
        %v797 = vand.u32 %v617, 2147483648
        %v798 = vsel %vm796, %v797, %v795
        %v799 = vrsqrt.pop %v618
        %v800 = vmul.f32 %v799, %v618
        %v801 = vmul.f32 %v800, %v799
        %v802 = vmul.f32 0.5, %v801
        %v803 = vsub.f32 1.5, %v802
        %v804 = vmul.f32 %v799, %v803
        %v805 = vmul.f32 %v618, %v804
        %vm806 = vcmp.eq.f32.partialorder %v618, inf
        %v807 = vsel %vm806, %v618, %v805
        %vm808 = vcmp.eq.f32.partialorder %v618, 0.0
        %v809 = vand.u32 %v618, 2147483648
        %v810 = vsel %vm808, %v809, %v807
        %v811 = vmul.f32 %v630, 84.19451
        %v812 = vmul.f32 %v642, 84.19451
        %v813 = vmul.f32 %v654, 84.19451
        %v814 = vmul.f32 %v666, 84.19451
        %v815 = vmul.f32 %v678, 84.19451
        %v816 = vmul.f32 %v690, 84.19451
        %v817 = vmul.f32 %v702, 84.19451
        %v818 = vmul.f32 %v714, 84.19451
        %v819 = vmul.f32 %v726, 84.19451
        %v820 = vmul.f32 %v738, 84.19451
        %v821 = vmul.f32 %v750, 84.19451
        %v822 = vmul.f32 %v762, 84.19451
        %v823 = vmul.f32 %v774, 84.19451
        %v824 = vmul.f32 %v786, 84.19451
        %v825 = vmul.f32 %v798, 84.19451
        %v826 = vmul.f32 %v810, 84.19451
        %v827 = vsub.f32 8.419452, %v811
        %v828 = vsub.f32 8.419452, %v812
        %v829 = vsub.f32 8.419452, %v813
        %v830 = vsub.f32 8.419452, %v814
        %v831 = vsub.f32 8.419452, %v815
        %v832 = vsub.f32 8.419452, %v816
        %v833 = vsub.f32 8.419452, %v817
        %v834 = vsub.f32 8.419452, %v818
        %v835 = vsub.f32 8.419452, %v819
        %v836 = vsub.f32 8.419452, %v820
        %v837 = vsub.f32 8.419452, %v821
        %v838 = vsub.f32 8.419452, %v822
        %v839 = vsub.f32 8.419452, %v823
        %v840 = vsub.f32 8.419452, %v824
        %v841 = vsub.f32 8.419452, %v825
        %v842 = vsub.f32 8.419452, %v826
        %v843 = vmax.f32 %v827, 0.0
        %v844 = vmax.f32 %v828, 0.0
        %v845 = vmax.f32 %v829, 0.0
        %v846 = vmax.f32 %v830, 0.0
        %v847 = vmax.f32 %v831, 0.0
        %v848 = vmax.f32 %v832, 0.0
        %v849 = vmax.f32 %v833, 0.0
        %v850 = vmax.f32 %v834, 0.0
        %v851 = vmax.f32 %v835, 0.0
        %v852 = vmax.f32 %v836, 0.0
        %v853 = vmax.f32 %v837, 0.0
        %v854 = vmax.f32 %v838, 0.0
        %v855 = vmax.f32 %v839, 0.0
        %v856 = vmax.f32 %v840, 0.0
        %v857 = vmax.f32 %v841, 0.0
        %v858 = vmax.f32 %v842, 0.0
        %v859 = vmul.f32 %v843, %v843
        %v860 = vmul.f32 %v844, %v844
        %v861 = vmul.f32 %v845, %v845
        %v862 = vmul.f32 %v846, %v846
        %v863 = vmul.f32 %v847, %v847
        %v864 = vmul.f32 %v848, %v848
        %v865 = vmul.f32 %v849, %v849
        %v866 = vmul.f32 %v850, %v850
        %v867 = vmul.f32 %v851, %v851
        %v868 = vmul.f32 %v852, %v852
        %v869 = vmul.f32 %v853, %v853
        %v870 = vmul.f32 %v854, %v854
        %v871 = vmul.f32 %v855, %v855
        %v872 = vmul.f32 %v856, %v856
        %v873 = vmul.f32 %v857, %v857
        %v874 = vmul.f32 %v858, %v858
        %v875 = vmul.f32 %v843, %v859
        %v876 = vmul.f32 %v844, %v860
        %v877 = vmul.f32 %v845, %v861
        %v878 = vmul.f32 %v846, %v862
        %v879 = vmul.f32 %v847, %v863
        %v880 = vmul.f32 %v848, %v864
        %v881 = vmul.f32 %v849, %v865
        %v882 = vmul.f32 %v850, %v866
        %v883 = vmul.f32 %v851, %v867
        %v884 = vmul.f32 %v852, %v868
        %v885 = vmul.f32 %v853, %v869
        %v886 = vmul.f32 %v854, %v870
        %v887 = vmul.f32 %v855, %v871
        %v888 = vmul.f32 %v856, %v872
        %v889 = vmul.f32 %v857, %v873
        %v890 = vmul.f32 %v858, %v874
        %v891 = vadd.f32 %v875, %v876
        %v892 = vadd.f32 %v891, %v877
        %v893 = vadd.f32 %v892, %v878
        %v894 = vadd.f32 %v893, %v879
        %v895 = vadd.f32 %v894, %v880
        %v896 = vadd.f32 %v895, %v881
        %v897 = vadd.f32 %v896, %v882
        %v898 = vadd.f32 %v897, %v883
        %v899 = vadd.f32 %v898, %v884
        %v900 = vadd.f32 %v899, %v885
        %v901 = vadd.f32 %v900, %v886
        %v902 = vadd.f32 %v901, %v887
        %v903 = vadd.f32 %v902, %v888
        %v904 = vadd.f32 %v903, %v889
        %v905 = vadd.f32 %v904, %v890
        %v906 = vrot.slane %v905, 4
        %v907 = vadd.f32 %v905, %v906
        %v908 = vrot.slane %v907, 2
        %v909 = vadd.f32 %v907, %v908
        %v910 = vrot.slane %v909, 1
        %v911 = vadd.f32 %v909, %v910
        %p912 = scmp.eq.s32.totalorder %s38, 0
        // Predicated region
        $region37: #{tpu_custom_call.1} parent=27 // pred_check
          %p913 = pneg %p912
        $region38: #{tpu_custom_call.1} parent=27 // pred_check_branch
          %915 = sbr.rel (%p913) target = $region40
        $region39: #{tpu_custom_call.1} parent=27 // pred_region
          %916 = vst [vmem:[%s234] sm:$0x1] 0.0
        $region40: #{tpu_custom_call.1} parent=27 // pred_fallthru
          _
        %v917 = vld [vmem:[%s234] sm:$0x1]
        %v918 = vadd.f32 %v917, %v911
        %919 = vst [vmem:[%s234] sm:$0x1] %v918
        // Predicated region
        $region41: #{tpu_custom_call.1} parent=27 // pred_check
          %p920 = pneg %p912
        $region42: #{tpu_custom_call.1} parent=27 // pred_check_branch
          %922 = sbr.rel (%p920) target = $region44
        $region43: #{tpu_custom_call.1} parent=27 // pred_region
          %v923 = vld [vmem:[%s234] sm:$0x1]
          %v924 = vmul.f32 %v923, 0.002341255
          %v925 = vsub.f32 %v924, 1.0
          %s926 = smul.u32 %s37, 128
          %v927 = vstv %s926
          %v928 = vadd.s32 %v927, %v240
          %vm929 = vcmp.lt.s32.totalorder %v928, %v243
          %v930 = vsel %vm929, %v925, 0.0
          %931 = vst [vmem:[%s234] sm:$0x1] %v930
        $region44: #{tpu_custom_call.1} parent=27 // pred_fallthru
          _
        %s932 = sand.u32 %s116, 1
        %s933 = scalar_lea.sflag [#allocation6], %s932
        %s934 = sand.u32 %s116, 1
        %s935 = scalar_lea.vmem [#allocation9], %s934
        // Predicated region
        $region45: #{tpu_custom_call.1} parent=27 // pred_check
          %p936 = pneg %p126
        $region46: #{tpu_custom_call.1} parent=27 // pred_check_branch
          %938 = sbr.rel (%p936) target = $region48
        $region47: #{tpu_custom_call.1} parent=27 // pred_region
          %940 = vsyncadd %s933, 0
          %s941 = sadd.s32 %s37, %s36
          %s942 = scalar_lea.hbm %s3, %s941
          %s944 = sshll.u32 %s935, 4
          %s945 = int_to_ptr.vmem [resolvable:$true] %s944
          %s946 = sshll.u32 %s942, 4
          %s947 = int_to_ptr.hbm [resolvable:$true] %s946
          %949 = dma.vmem_to_hbm [thread:$0]  %s945, 16, %s947, %s933
        $region48: #{tpu_custom_call.1} parent=27 // pred_fallthru
          _
      $region28: #{tpu_custom_call.1} parent=5 // pred_fallthru
        _
      %p950 = scmp.le.s32.totalorder 2, %s26
      // Predicated region
      $region49: #{tpu_custom_call.1} parent=5 // pred_check
        %p951 = pneg %p950
      $region50: #{tpu_custom_call.1} parent=5 // pred_check_branch
        %953 = sbr.rel (%p951) target = $region52
      $region51: #{tpu_custom_call.1} parent=5 // pred_region
        %s954 = ssub.s32 %s26, 2
        // Predicated region
        $region53: #{tpu_custom_call.1} parent=51 // pred_check
          %p955 = pneg %p132
        $region54: #{tpu_custom_call.1} parent=51 // pred_check_branch
          %957 = sbr.rel (%p955) target = $region56
        $region55: #{tpu_custom_call.1} parent=51 // pred_region
          %s958 = sand.u32 %s117, 1
          %s959 = scalar_lea.sflag [#allocation6], %s958
          %s960 = sand.u32 %s117, 1
          %s961 = scalar_lea.vmem [#allocation9], %s960
          %963 = dma.done %s959, 16
        $region56: #{tpu_custom_call.1} parent=51 // pred_fallthru
          _
      $region52: #{tpu_custom_call.1} parent=5 // pred_fallthru
        _
    $region6: #{tpu_custom_call.1} parent=1 // loop_footer
      %s30 = sadd.s32 1, %s26
    $region7: #{tpu_custom_call.1} parent=1 // loop_footer_branch
      %25 = sbr.rel target = $region3
    $region8: #{tpu_custom_call.1} parent=1 // loop_exit
      _
    %964 = vsyncpa [#allocation5], 1
    %s965 = scalar_lea.sflag [#allocation5], 1
    %966 = vsyncpa %s965, 1
    %967 = vsyncpa [#allocation8], 1
    %s968 = scalar_lea.sflag [#allocation8], 1
    %969 = vsyncpa %s968, 1
    %970 = vsyncpa [#allocation6], 1
    %s971 = scalar_lea.sflag [#allocation6], 1
    %972 = vsyncpa %s971, 1

</llo_original>
